<compile_context>
chip_gen: v7x
topology: tpu7x:2x2x1
jax: 0.10.0
libtpu: 0.0.40
codegen_flags: <defaults>
</compile_context>

<pallas_src>
import functools

import jax
import jax.numpy as jnp
from jax.experimental import pallas as pl
from jax.experimental.pallas import tpu as pltpu


def _round_up(a, b):
    return (a + b - 1) // b * b


def _vmem_limit_bytes():
    """Generation-aware scoped-VMEM limit: ~3/4 of physical, safe fallback."""
    phys = 64 * 1024 * 1024  # v7x per-TensorCore physical VMEM (smallest gen)
    try:
        phys = int(getattr(pltpu.get_tpu_info(), "vmem_capacity_bytes", phys)) or phys
    except Exception:
        pass
    return int(max(32 * 1024 * 1024, min(3 * phys // 4, 96 * 1024 * 1024)))


def _tile_rows(batch, num_classes, itemsize, vmem_limit, requested=None):
    """Rows per batch tile, sized against the full per-step VMEM working set."""
    # Sublane-packing alignment: 8 rows (f32), 16 (bf16), 32 (int8/fp8).
    align = max(8, 32 // itemsize)
    # Per-row working-set bytes for one pipelined grid step:
    #   2 * C * itemsize  -> double-buffered HBM->VMEM input slabs
    #   C * 4             -> f32 widened slab (live across the max reduce)
    #   C * 4             -> exp(x - m) temporary
    per_row_bytes = num_classes * (2 * itemsize + 8) + 64
    budget = (vmem_limit * 3) // 5  # headroom for output/compiler scratch
    if align * per_row_bytes > budget:
        # TODO(synk): C-axis tiling with an online-logsumexp accumulator would
        # remove this limit for huge class counts.
        raise ValueError(
            f"num_classes={num_classes} too large for VMEM budget {budget} B; "
            "needs C-axis tiling.")
    max_rows = (budget // per_row_bytes) // align * align
    # Cap each input DMA slab at ~8 MiB: already amortizes the ~0.35us/step
    # pipeline overhead even at v7x's 3.2 TB/s HBM.
    slab_rows = ((8 * 1024 * 1024) // (num_classes * itemsize)) // align * align
    max_rows = max(align, min(max_rows, slab_rows))
    rows = max_rows if requested is None else _round_up(int(requested), align)
    rows = min(rows, max_rows, _round_up(batch, align))
    return max(rows, align)


def _nce_softmax_loss_kernel(x_ref, out_ref, *, batch_size, tiles_per_split,
                             needs_mask):
    c = pl.program_id(0)  # core-split axis ("parallel": both v7x TensorCores)
    i = pl.program_id(1)  # reduction axis ("arbitrary"): out block stays resident

    @pl.when(i == 0)
    def _init():
        out_ref[...] = jnp.zeros_like(out_ref)

    tile_rows = x_ref.shape[0]

    # Target-class (label 0) column straight from the ref so the widened f32
    # slab's live range can end right after the exp (lower VMEM/vreg pressure).
    x0 = x_ref[:, 0:1].astype(jnp.float32)                    # (TILE_B, 1)

    # Numerically stable logsumexp; math/accumulation always f32.
    x = x_ref[...].astype(jnp.float32)                        # (TILE_B, C)
    m = jnp.max(x, axis=-1, keepdims=True)                    # (TILE_B, 1)
    s = jnp.sum(jnp.exp(x - m), axis=-1, keepdims=True)       # (TILE_B, 1)

    # Per-row cross entropy with target 0: (m - x0) + log(s) -- minimal
    # (TILE_B, 1) chain.
    # TODO(synk): relayout the (TILE_B,1) epilogue into a lane-dense
    # (TILE_B//128, 128) block if EUP becomes binding for very small C.
    per_row = (m - x0) + jnp.log(s)

    if needs_mask:
        # Statically elided when the batch divides the tiling exactly.  Zeros
        # padded tail rows and rows of a duplicated (clamped) tile so they
        # contribute nothing to the sum.
        logical_tile = c * tiles_per_split + i
        row_id = (jax.lax.broadcasted_iota(jnp.int32, (tile_rows, 1), 0)
                  + logical_tile * tile_rows)
        per_row = jnp.where(row_id < batch_size, per_row, 0.0)

    out_ref[...] += jnp.sum(per_row, axis=0, keepdims=True).reshape(1, 1, 1)


def nce_softmax_loss(x, *, tile_rows=None):
    """Pallas implementation of NCESoftmaxLoss.forward.

    Args:
      x: logits of shape [B, C] (f32 or bf16; math/accumulation in f32).
      tile_rows: optional batch tile size override (validated & clamped).

    Returns:
      Scalar f32 loss.
    """
    batch, num_classes = x.shape
    itemsize = jnp.dtype(x.dtype).itemsize
    vmem_limit = _vmem_limit_bytes()
    tile_rows = _tile_rows(batch, num_classes, itemsize, vmem_limit, tile_rows)
    num_tiles = pl.cdiv(batch, tile_rows)

    # Core-parallel split: uses both v7x TensorCores; on 1-TC chips it is just
    # a sequential outer loop.  Only split when the worst-case duplicated
    # (masked) tile costs little relative to the grid.
    if num_tiles >= 2 and (num_tiles % 2 == 0 or num_tiles >= 9):
        num_splits = 2
    else:
        num_splits = 1
    tiles_per_split = pl.cdiv(num_tiles, num_splits)
    needs_mask = (batch % tile_rows != 0) or (num_splits * tiles_per_split != num_tiles)

    def x_index_map(c, i):
        # Clamp so an odd tile count never issues a fully out-of-bounds DMA;
        # the duplicated tile's rows are masked to zero in the kernel.
        return (jnp.minimum(c * tiles_per_split + i, num_tiles - 1), 0)

    kernel = functools.partial(
        _nce_softmax_loss_kernel,
        batch_size=batch, tiles_per_split=tiles_per_split, needs_mask=needs_mask)

    cost = pl.CostEstimate(
        flops=4 * batch * num_classes,
        transcendentals=batch * num_classes + batch,
        bytes_accessed=batch * num_classes * itemsize + num_splits * 4,
    )

    partials = pl.pallas_call(
        kernel,
        out_shape=jax.ShapeDtypeStruct((num_splits, 1, 1), jnp.float32),
        grid_spec=pltpu.PrefetchScalarGridSpec(
            num_scalar_prefetch=0,
            grid=(num_splits, tiles_per_split),
            in_specs=[pl.BlockSpec((tile_rows, num_classes), x_index_map)],
            out_specs=pl.BlockSpec((1, 1, 1), lambda c, i: (c, 0, 0)),
        ),
        compiler_params=pltpu.CompilerParams(
            dimension_semantics=("parallel", "arbitrary"),
            vmem_limit_bytes=vmem_limit,
        ),
        cost_estimate=cost,
    )(x)

    # Mean over the batch; per-split partial sums are already exact/masked.
    return jnp.sum(partials) * (1.0 / batch)


def nce_softmax_loss_ref(x):
    """Pure-JAX reference (mirrors torch CrossEntropyLoss with all-zero labels)."""
    x = x.astype(jnp.float32)
    lse = jax.scipy.special.logsumexp(x, axis=-1)
    return jnp.mean(lse - x[:, 0])


if __name__ == "__main__":
    key = jax.random.PRNGKey(0)
    k0, k1, k2, k3, k4 = jax.random.split(key, 5)

    # 1) Small info-NCE head: batch=8, 1 positive + 127 negatives -> [8, 128].
    x = jax.random.normal(k0, (8, 128), dtype=jnp.float32)
    loss = nce_softmax_loss(x)
    jax.block_until_ready(loss)
    assert jnp.allclose(loss, nce_softmax_loss_ref(x), atol=1e-5, rtol=1e-5)

    # 2) Multi-tile grid with a masked (partial) tail tile: B=20 rows, tile 8.
    x2 = jax.random.normal(k1, (20, 96), dtype=jnp.float32)
    loss2 = nce_softmax_loss(x2, tile_rows=8)
    jax.block_until_ready(loss2)
    assert jnp.allclose(loss2, nce_softmax_loss_ref(x2), atol=1e-5, rtol=1e-5)

    # 3) bf16 HBM residency (half the DMA bytes); f32 math inside the kernel.
    x3 = jax.random.normal(k2, (8, 128), dtype=jnp.bfloat16)
    loss3 = nce_softmax_loss(x3)
    jax.block_until_ready(loss3)
    assert jnp.allclose(loss3, nce_softmax_loss_ref(x3), atol=5e-2, rtol=5e-2)

    # 4) Even tile count -> 2-way core-parallel split, mask statically elided.
    x4 = jax.random.normal(k3, (64, 128), dtype=jnp.float32)
    loss4 = nce_softmax_loss(x4, tile_rows=16)
    jax.block_until_ready(loss4)
    assert jnp.allclose(loss4, nce_softmax_loss_ref(x4), atol=1e-5, rtol=1e-5)

    # 5) Odd tile count (9 tiles) -> split with one clamped+masked duplicate tile.
    x5 = jax.random.normal(k4, (72, 96), dtype=jnp.float32)
    loss5 = nce_softmax_loss(x5, tile_rows=8)
    jax.block_until_ready(loss5)
    assert jnp.allclose(loss5, nce_softmax_loss_ref(x5), atol=1e-5, rtol=1e-5)

    print("KERNEL_OK")
</pallas_src>

<mosaic_0001>
module attributes {stable_mosaic.version = 11 : i64} {
  func.func @_nce_softmax_loss_kernel(%arg0: i32, %arg1: i32, %arg2: memref<8x128xf32, #tpu.memory_space<vmem>>, %arg3: memref<1x1x1xf32, #tpu.memory_space<vmem>>) attributes {dimension_semantics = [#tpu.dimension_semantics<parallel>, #tpu.dimension_semantics<arbitrary>], iteration_bounds = array<i64: 1, 1>, scalar_prefetch = 0 : i64, scratch_operands = 0 : i64, tpu.core_type = #tpu.core_type<tc>, window_params = [{transform_indices = @transform_0, window_bounds = array<i64: 8, 128>}, {transform_indices = @transform_1, window_bounds = array<i64: 1, 1, 1>}]} {
    %c0_i32 = arith.constant 0 : i32
    %0 = arith.cmpi eq, %arg1, %c0_i32 : i32
    %1 = arith.extui %0 : i1 to i32
    %c0_i32_0 = arith.constant 0 : i32
    %2 = arith.cmpi ne, %1, %c0_i32_0 : i32
    scf.if %2 {
      %cst_12 = arith.constant 0.000000e+00 : f32
      %21 = vector.broadcast %cst_12 : f32 to vector<1x1x1xf32>
      %c0_13 = arith.constant 0 : index
      %c0_14 = arith.constant 0 : index
      %c0_15 = arith.constant 0 : index
      %22 = vector.load %arg3[%c0_13, %c0_14, %c0_15] : memref<1x1x1xf32, #tpu.memory_space<vmem>>, vector<1x1x1xf32>
      tpu.vector_store %arg3[%c0_13, %c0_14, %c0_15], %21 {strides = array<i32>} : memref<1x1x1xf32, #tpu.memory_space<vmem>>, vector<1x1x1xf32>,
    } else {
    }
    %c0 = arith.constant 0 : index
    %c0_1 = arith.constant 0 : index
    %3 = vector.load %arg2[%c0, %c0_1] : memref<8x128xf32, #tpu.memory_space<vmem>>, vector<8x1xf32>
    %c0_2 = arith.constant 0 : index
    %c0_3 = arith.constant 0 : index
    %4 = vector.load %arg2[%c0_2, %c0_3] : memref<8x128xf32, #tpu.memory_space<vmem>>, vector<8x128xf32>
    %cst = arith.constant dense<0xFF800000> : vector<8xf32>
    %5 = vector.multi_reduction <maximumf>, %4, %cst [1] : vector<8x128xf32> to vector<8xf32>
    %6 = vector.shape_cast %5 : vector<8xf32> to vector<8x1xf32>
    %7 = vector.broadcast %6 : vector<8x1xf32> to vector<8x128xf32>
    %8 = arith.subf %4, %7 : vector<8x128xf32>
    %9 = math.exp %8 : vector<8x128xf32>
    %cst_4 = arith.constant dense<0.000000e+00> : vector<8xf32>
    %10 = vector.multi_reduction <add>, %9, %cst_4 [1] : vector<8x128xf32> to vector<8xf32>
    %11 = vector.shape_cast %10 : vector<8xf32> to vector<8x1xf32>
    %12 = arith.subf %6, %3 : vector<8x1xf32>
    %13 = math.log %11 : vector<8x1xf32>
    %14 = arith.addf %12, %13 : vector<8x1xf32>
    %c0_5 = arith.constant 0 : index
    %c0_6 = arith.constant 0 : index
    %c0_7 = arith.constant 0 : index
    %15 = vector.load %arg3[%c0_5, %c0_6, %c0_7] : memref<1x1x1xf32, #tpu.memory_space<vmem>>, vector<1x1x1xf32>
    %cst_8 = arith.constant dense<0.000000e+00> : vector<1xf32>
    %16 = vector.multi_reduction <add>, %14, %cst_8 [0] : vector<8x1xf32> to vector<1xf32>
    %17 = vector.shape_cast %16 : vector<1xf32> to vector<1x1xf32>
    %18 = vector.shape_cast %17 : vector<1x1xf32> to vector<1x1x1xf32>
    %19 = arith.addf %15, %18 : vector<1x1x1xf32>
    %c0_9 = arith.constant 0 : index
    %c0_10 = arith.constant 0 : index
    %c0_11 = arith.constant 0 : index
    %20 = vector.load %arg3[%c0_9, %c0_10, %c0_11] : memref<1x1x1xf32, #tpu.memory_space<vmem>>, vector<1x1x1xf32>
    tpu.vector_store %arg3[%c0_9, %c0_10, %c0_11], %19 {strides = array<i32>} : memref<1x1x1xf32, #tpu.memory_space<vmem>>, vector<1x1x1xf32>,
    return
  }
  func.func @transform_0(%arg0: i32, %arg1: i32) -> (i32, i32) {
    %c1_i32 = arith.constant 1 : i32
    %0 = arith.muli %arg0, %c1_i32 : i32
    %1 = arith.addi %0, %arg1 : i32
    %c0_i32 = arith.constant 0 : i32
    %2 = arith.minsi %1, %c0_i32 : i32
    %c0_i32_0 = arith.constant 0 : i32
    %c0_i32_1 = arith.constant 0 : i32
    return %2, %c0_i32_0 : i32, i32
  }
  func.func @transform_1(%arg0: i32, %arg1: i32) -> (i32, i32, i32) {
    %c0_i32 = arith.constant 0 : i32
    %c0_i32_0 = arith.constant 0 : i32
    %c0_i32_1 = arith.constant 0 : i32
    return %arg0, %c0_i32, %c0_i32_0 : i32, i32, i32
  }
}

</mosaic_0001>

<llo_original>
// kernel: tpu_custom_call.1
$region0: #{tpu_custom_call.1}
  #allocation0 [shape = 'u32[]', space=smem, size = 0x4, offset = 0x4, fixed_abs, tag = 'smem constant byte address 0x4 - core index']
  #allocation1 [shape = 'u32[144,128]{1,0:T(1,128)}', space=vmem, size = 0x12000, scoped, tag = 'internal scratch']
  %s0 = inlined_call_operand.hbm [shape: f32[8,128], index: 0, kind: input, shape index: {}]
  %s1 = inlined_call_operand.hbm [shape: f32[1,1,1], index: 1, kind: output, shape index: {}]
  %s2 = sld [smem:[#allocation0]]
  $region22: #{tpu_custom_call.1} parent=0
    _
  %s4 = ssub.s32 1, %s2
  %s5 = scalar_select 0, %s4, %s2
  $region1: #{tpu_custom_call.1} parent=0
    #allocation2 [shape = 'u8[4096]{0}', space=vmem, size = 0x1000, scoped, tag = 'input window, operand 0, single buffered']
    #allocation3 [shape = 's32[1]{0}', space=sflag, size = 0x4, scoped, tag = 'scoped memory for tpu_custom_call.1']
    #allocation4 [shape = 's32[1]{0}', space=sflag, size = 0x4, scoped, tag = 'scoped memory for tpu_custom_call.1']
    #allocation5 [shape = 'u8[512]{0}', space=vmem, size = 0x400, scoped, tag = 'output window, operand 0, single buffered']
    %6 = vsyncpa [#allocation3], 0
    %7 = vsyncpa [#allocation4], 0
    // Predicated region
    $region2: #{tpu_custom_call.1} parent=1 // pred_check
      _
    $region3: #{tpu_custom_call.1} parent=1 // pred_check_branch
      %9 = sbr.rel (0) target = $region5
    $region4: #{tpu_custom_call.1} parent=1 // pred_region
      %s10 = sadd.s32 0, 0
      %p11 = scmp.lt.s32.totalorder %s10, 0
      %s12 = scalar_select %p11, %s10, 0
      %s14 = ssub.s32 128, 128
      %15 = vsyncadd [#allocation3], %s14
      %s16 = smul.addr %s12, 128
      %s17 = scalar_lea.hbm %s0, %s16
      %s19 = sshll.u32 [#allocation2], 4
      %s20 = int_to_ptr.vmem [resolvable:$true] %s19
      %22 = dma.hbm_to_vmem [thread:$0]  %s17, 128, %s20, [#allocation3]
    $region5: #{tpu_custom_call.1} parent=1 // pred_fallthru
      _
    // Predicated region
    $region6: #{tpu_custom_call.1} parent=1 // pred_check
      _
    $region7: #{tpu_custom_call.1} parent=1 // pred_check_branch
      %24 = sbr.rel (0) target = $region9
    $region8: #{tpu_custom_call.1} parent=1 // pred_region
      %25 = dma.done [#allocation3], 128
    $region9: #{tpu_custom_call.1} parent=1 // pred_fallthru
      _
    %s26 = sadd.s32 0, 0
    %p27 = scmp.lt.s32.totalorder %s26, 0
    %s28 = scalar_select %p27, %s26, 0
    %p29 = scmp.eq.s32.totalorder 0, 0
    // Predicated region
    $region10: #{tpu_custom_call.1} parent=1 // pred_check
      %p30 = pneg %p29
    $region11: #{tpu_custom_call.1} parent=1 // pred_check_branch
      %32 = sbr.rel (%p30) target = $region13
    $region12: #{tpu_custom_call.1} parent=1 // pred_region
      %vm33 = vcmask 0
      %34 = vst.msk [vmem:[#allocation5] sm:$0x1] %vm33, 0.0
    $region13: #{tpu_custom_call.1} parent=1 // pred_fallthru
      _
    %v35 = vld [vmem:[#allocation2] sm:$0xff]
    %36 = vmax.xlane.f32.xlu0 %v35
    %v37 = vpop.xlane.xlu0 %36
    %v38 = vsub.f32 %v35, %v37
    %v39 = vmul.f32 %v38, 1.442695
    %v40 = vpow.pop %v39
    %41 = vadd.xlane.f32.xlu0 %v40
    %v42 = vpop.xlane.xlu0 %41
    %v43 = vsub.f32 %v37, %v35
    %v44 = vlog2.pop %v42
    %v45 = vmul.f32 %v44, 0.6931472
    %v46 = vadd.f32 %v43, %v45
    %v47 = vld [vmem:[#allocation5] sm:$0x1]
    %vm48 = vcmask 7168
    %v49 = vsel %vm48, %v46, 0.0
    %v50 = vrot.slane %v49, 4
    %v51 = vadd.f32 %v49, %v50
    %v52 = vrot.slane %v51, 2
    %v53 = vadd.f32 %v51, %v52
    %v54 = vrot.slane %v53, 1
    %v55 = vadd.f32 %v53, %v54
    %v56 = vadd.f32 %v47, %v55
    %vm57 = vcmask 0
    %58 = vst.msk [vmem:[#allocation5] sm:$0x1] %vm57, %v56
    // Predicated region
    $region14: #{tpu_custom_call.1} parent=1 // pred_check
      _
    $region15: #{tpu_custom_call.1} parent=1 // pred_check_branch
      %60 = sbr.rel (0) target = $region17
    $region16: #{tpu_custom_call.1} parent=1 // pred_region
      %s62 = ssub.s32 16, 16
      %63 = vsyncadd [#allocation4], %s62
      %s65 = sshll.u32 [#allocation5], 4
      %s66 = int_to_ptr.vmem [resolvable:$true] %s65
      %68 = dma.vmem_to_hbm [thread:$0]  %s66, 16, %s1, [#allocation4]
    $region17: #{tpu_custom_call.1} parent=1 // pred_fallthru
      _
    // Predicated region
    $region18: #{tpu_custom_call.1} parent=1 // pred_check
      _
    $region19: #{tpu_custom_call.1} parent=1 // pred_check_branch
      %70 = sbr.rel (0) target = $region21
    $region20: #{tpu_custom_call.1} parent=1 // pred_region
      %71 = dma.done [#allocation4], 16
    $region21: #{tpu_custom_call.1} parent=1 // pred_fallthru
      _
    %72 = vsyncpa [#allocation3], 1
    %73 = vsyncpa [#allocation4], 1

</llo_original>
